<compile_context>
chip_gen: v7x
topology: tpu7x:2x2x1
jax: 0.10.0
libtpu: 0.0.40
codegen_flags: <defaults>
</compile_context>

<pallas_src>
import math

import jax
import jax.numpy as jnp
from jax.experimental import pallas as pl
from jax.experimental.pallas import tpu as pltpu


def _make_rope_kernel(scaling_factor: float, num_heads: int, head_dim: int):
    half = head_dim // 2

    def kernel(pos_ref, inv_freq_ref, sign_scale_ref, q_ref, k_ref, qo_ref, ko_ref):
        # ---- cos / sign-folded sin built once per (batch, seq-tile) --------
        pos = pos_ref[...]                      # (tS, 1)  f32, positions on sublanes
        inv_freq = inv_freq_ref[...]            # (1, D)   f32, half-freqs duplicated
        freqs = pos * inv_freq                  # (tS, D)  f32 outer product via bcast

        cmp_dt = q_ref.dtype                    # compute in the input dtype
        cos = (jnp.cos(freqs) * scaling_factor).astype(cmp_dt)           # (tS, D)
        # sign_scale = concat([-scale, +scale]) so that
        #   roll(x, D//2) * sin_s == rotate_half(x) * (sin * scale)
        sin_s = (jnp.sin(freqs) * sign_scale_ref[...]).astype(cmp_dt)    # (tS, D)

        # ---- apply to every head (static unrolled loop; H is small) --------
        for h in range(num_heads):
            xq = q_ref[h]                                                # (tS, D)
            qo_ref[h] = (xq * cos
                         + pltpu.roll(xq, shift=half, axis=1) * sin_s
                         ).astype(qo_ref.dtype)
            xk = k_ref[h]
            ko_ref[h] = (xk * cos
                         + pltpu.roll(xk, shift=half, axis=1) * sin_s
                         ).astype(ko_ref.dtype)

    return kernel


def _pick_seq_block(S, H, D, itemsize, budget_bytes):
    """Largest seq tile whose double-buffered streams fit the VMEM budget."""
    # Per sequence row resident per grid step:
    #   q, k, qo, ko streams x 2 (double buffer): 8 * H * D * itemsize bytes
    #   f32 cos / sin tables:                     2 * D * 4 bytes
    per_row = 8 * H * D * itemsize + 8 * D
    rows = max(1, budget_bytes // per_row)
    if rows >= S:
        return S
    # Keep the tile sublane friendly (multiple of 128 rows) when tiling S.
    return min(S, max(128, (rows // 128) * 128))


def su_rope(q, k, position_ids, short_factor, rope_theta,
            max_position_embeddings, original_max_position_embeddings,
            *, seq_block=None, vmem_budget_bytes=16 << 20):
    """Pallas implementation of SuRoPE.forward(q, k, position_ids)."""
    B, H, S, D = q.shape
    assert k.shape == (B, H, S, D)
    half = D // 2

    # ----- parameter / buffer setup (plain JAX glue, mirrors __init__) -----
    scaling_factor = math.sqrt(
        1.0 + math.log(max_position_embeddings / original_max_position_embeddings)
        / math.log(original_max_position_embeddings))
    exponents = jnp.power(
        jnp.float32(rope_theta), jnp.arange(0, D, 2, dtype=jnp.float32) / D)
    inv_freq_h = 1.0 / (short_factor.astype(jnp.float32) * exponents)        # (half,)
    inv_freq_full = jnp.concatenate([inv_freq_h, inv_freq_h]).reshape(1, D)  # (1, D)
    sign_scale = jnp.concatenate(
        [jnp.full((half,), -scaling_factor, jnp.float32),
         jnp.full((half,), scaling_factor, jnp.float32)]).reshape(1, D)      # (1, D)
    pos_f32 = position_ids.astype(jnp.float32).reshape(B, S, 1)              # (B, S, 1)

    if seq_block is None:
        seq_block = _pick_seq_block(S, H, D, q.dtype.itemsize, vmem_budget_bytes)
    tS = int(seq_block)
    n_s = pl.cdiv(S, tS)

    kernel = _make_rope_kernel(scaling_factor, H, D)

    # Batch dim is squeezed out of the kernel refs (block dim = None).
    qk_spec = pl.BlockSpec((None, H, tS, D), lambda b, s: (b, 0, s, 0))
    pos_spec = pl.BlockSpec((None, tS, 1), lambda b, s: (b, s, 0))
    tbl_spec = pl.BlockSpec((1, D), lambda b, s: (0, 0))

    out_shape = (jax.ShapeDtypeStruct(q.shape, q.dtype),
                 jax.ShapeDtypeStruct(k.shape, k.dtype))

    qo, ko = pl.pallas_call(
        kernel,
        out_shape=out_shape,
        grid_spec=pltpu.PrefetchScalarGridSpec(
            num_scalar_prefetch=0,
            grid=(B, n_s),
            in_specs=[
                pos_spec,     # position_ids column tile (positions on sublanes)
                tbl_spec,     # full-width inv_freq (half-freqs duplicated)
                tbl_spec,     # sign-folded scaling vector
                qk_spec,      # q tile (all heads)
                qk_spec,      # k tile (all heads)
            ],
            out_specs=[qk_spec, qk_spec],
        ),
        compiler_params=pltpu.CompilerParams(
            dimension_semantics=("parallel", "parallel"),
            vmem_limit_bytes=32 * 1024 * 1024),
    )(pos_f32, inv_freq_full, sign_scale, q, k)
    return qo, ko


if __name__ == "__main__":
    # Small, deterministic config (hidden=256, heads=2 -> head_dim=128).
    B, H, S, D = 2, 2, 16, 128
    rope_theta = 10000.0
    original_max_position_embeddings = 4096
    max_position_embeddings = 8192

    key = jax.random.PRNGKey(0)
    kq, kk_ = jax.random.split(key)
    q = jax.random.normal(kq, (B, H, S, D), dtype=jnp.float32)
    k = jax.random.normal(kk_, (B, H, S, D), dtype=jnp.float32)
    position_ids = jnp.tile(jnp.arange(S, dtype=jnp.int32)[None, :], (B, 1))

    # Deterministic rope_scaling['short_factor'] buffer (length head_dim // 2).
    short_factor = 1.0 + 0.1 * jnp.arange(D // 2, dtype=jnp.float32)

    qo, ko = su_rope(q, k, position_ids, short_factor, rope_theta,
                     max_position_embeddings, original_max_position_embeddings)
    jax.block_until_ready((qo, ko))

    # ----- pure-JAX reference replicating the PyTorch forward exactly -----
    scaling = math.sqrt(
        1.0 + math.log(max_position_embeddings / original_max_position_embeddings)
        / math.log(original_max_position_embeddings))
    inv_freq_ref = 1.0 / (short_factor * jnp.power(
        jnp.float32(rope_theta), jnp.arange(0, D, 2, dtype=jnp.float32) / D))
    freqs = position_ids.astype(jnp.float32)[:, :, None] * inv_freq_ref[None, None, :]
    emb = jnp.concatenate([freqs, freqs], axis=-1)
    cos = (jnp.cos(emb) * scaling)[:, None, :, :]
    sin = (jnp.sin(emb) * scaling)[:, None, :, :]

    def rotate_half(x):
        h = x.shape[-1] // 2
        return jnp.concatenate([-x[..., h:], x[..., :h]], axis=-1)

    q_expect = q * cos + rotate_half(q) * sin
    k_expect = k * cos + rotate_half(k) * sin

    assert jnp.allclose(qo, q_expect, atol=1e-5, rtol=1e-5), "q mismatch"
    assert jnp.allclose(ko, k_expect, atol=1e-5, rtol=1e-5), "k mismatch"
    print("KERNEL_OK")
</pallas_src>

<mosaic_0001>
module attributes {stable_mosaic.version = 11 : i64} {
  func.func @kernel(%arg0: i32, %arg1: i32, %arg2: memref<1x16x1xf32, #tpu.memory_space<vmem>>, %arg3: memref<1x128xf32, #tpu.memory_space<vmem>>, %arg4: memref<1x128xf32, #tpu.memory_space<vmem>>, %arg5: memref<1x2x16x128xf32, #tpu.memory_space<vmem>>, %arg6: memref<1x2x16x128xf32, #tpu.memory_space<vmem>>, %arg7: memref<1x2x16x128xf32, #tpu.memory_space<vmem>>, %arg8: memref<1x2x16x128xf32, #tpu.memory_space<vmem>>) attributes {dimension_semantics = [#tpu.dimension_semantics<parallel>, #tpu.dimension_semantics<parallel>], iteration_bounds = array<i64: 2, 1>, scalar_prefetch = 0 : i64, scratch_operands = 0 : i64, tpu.core_type = #tpu.core_type<tc>, window_params = [{transform_indices = @transform_0, window_bounds = array<i64: 1, 16, 1>}, {pipeline_mode = #tpu.pipeline_mode<synchronous>, transform_indices = @transform_1, window_bounds = array<i64: 1, 128>}, {pipeline_mode = #tpu.pipeline_mode<synchronous>, transform_indices = @transform_2, window_bounds = array<i64: 1, 128>}, {transform_indices = @transform_3, window_bounds = array<i64: 1, 2, 16, 128>}, {transform_indices = @transform_4, window_bounds = array<i64: 1, 2, 16, 128>}, {transform_indices = @transform_5, window_bounds = array<i64: 1, 2, 16, 128>}, {transform_indices = @transform_6, window_bounds = array<i64: 1, 2, 16, 128>}]} {
    %c0 = arith.constant 0 : index
    %c0_0 = arith.constant 0 : index
    %c0_1 = arith.constant 0 : index
    %0 = vector.load %arg2[%c0, %c0_0, %c0_1] : memref<1x16x1xf32, #tpu.memory_space<vmem>>, vector<1x16x1xf32>
    %1 = vector.shape_cast %0 : vector<1x16x1xf32> to vector<16x1xf32>
    %c0_2 = arith.constant 0 : index
    %c0_3 = arith.constant 0 : index
    %2 = vector.load %arg3[%c0_2, %c0_3] : memref<1x128xf32, #tpu.memory_space<vmem>>, vector<1x128xf32>
    %3 = vector.broadcast %1 : vector<16x1xf32> to vector<16x128xf32>
    %4 = vector.broadcast %2 : vector<1x128xf32> to vector<16x128xf32>
    %5 = arith.mulf %3, %4 : vector<16x128xf32>
    %6 = math.cos %5 : vector<16x128xf32>
    %cst = arith.constant 1.040833 : f32
    %7 = vector.broadcast %cst : f32 to vector<16x128xf32>
    %8 = arith.mulf %6, %7 : vector<16x128xf32>
    %9 = math.sin %5 : vector<16x128xf32>
    %c0_4 = arith.constant 0 : index
    %c0_5 = arith.constant 0 : index
    %10 = vector.load %arg4[%c0_4, %c0_5] : memref<1x128xf32, #tpu.memory_space<vmem>>, vector<1x128xf32>
    %11 = vector.broadcast %10 : vector<1x128xf32> to vector<16x128xf32>
    %12 = arith.mulf %9, %11 : vector<16x128xf32>
    %c0_6 = arith.constant 0 : index
    %c0_7 = arith.constant 0 : index
    %c0_8 = arith.constant 0 : index
    %c0_9 = arith.constant 0 : index
    %13 = vector.load %arg5[%c0_6, %c0_7, %c0_8, %c0_9] : memref<1x2x16x128xf32, #tpu.memory_space<vmem>>, vector<1x1x16x128xf32>
    %14 = vector.shape_cast %13 : vector<1x1x16x128xf32> to vector<16x128xf32>
    %15 = arith.mulf %14, %8 : vector<16x128xf32>
    %c64_i32 = arith.constant 64 : i32
    %16 = tpu.dynamic_rotate %14 by %c64_i32 dim 1 : vector<16x128xf32>, i32 -> vector<16x128xf32>
    %17 = arith.mulf %16, %12 : vector<16x128xf32>
    %18 = arith.addf %15, %17 : vector<16x128xf32>
    %c0_10 = arith.constant 0 : index
    %c0_11 = arith.constant 0 : index
    %c0_12 = arith.constant 0 : index
    %c0_13 = arith.constant 0 : index
    %19 = vector.load %arg7[%c0_10, %c0_11, %c0_12, %c0_13] : memref<1x2x16x128xf32, #tpu.memory_space<vmem>>, vector<1x1x16x128xf32>
    %20 = vector.shape_cast %19 : vector<1x1x16x128xf32> to vector<16x128xf32>
    %21 = vector.shape_cast %18 : vector<16x128xf32> to vector<1x1x16x128xf32>
    tpu.vector_store %arg7[%c0_10, %c0_11, %c0_12, %c0_13], %21 {strides = array<i32>} : memref<1x2x16x128xf32, #tpu.memory_space<vmem>>, vector<1x1x16x128xf32>,
    %c0_14 = arith.constant 0 : index
    %c0_15 = arith.constant 0 : index
    %c0_16 = arith.constant 0 : index
    %c0_17 = arith.constant 0 : index
    %22 = vector.load %arg6[%c0_14, %c0_15, %c0_16, %c0_17] : memref<1x2x16x128xf32, #tpu.memory_space<vmem>>, vector<1x1x16x128xf32>
    %23 = vector.shape_cast %22 : vector<1x1x16x128xf32> to vector<16x128xf32>
    %24 = arith.mulf %23, %8 : vector<16x128xf32>
    %c64_i32_18 = arith.constant 64 : i32
    %25 = tpu.dynamic_rotate %23 by %c64_i32_18 dim 1 : vector<16x128xf32>, i32 -> vector<16x128xf32>
    %26 = arith.mulf %25, %12 : vector<16x128xf32>
    %27 = arith.addf %24, %26 : vector<16x128xf32>
    %c0_19 = arith.constant 0 : index
    %c0_20 = arith.constant 0 : index
    %c0_21 = arith.constant 0 : index
    %c0_22 = arith.constant 0 : index
    %28 = vector.load %arg8[%c0_19, %c0_20, %c0_21, %c0_22] : memref<1x2x16x128xf32, #tpu.memory_space<vmem>>, vector<1x1x16x128xf32>
    %29 = vector.shape_cast %28 : vector<1x1x16x128xf32> to vector<16x128xf32>
    %30 = vector.shape_cast %27 : vector<16x128xf32> to vector<1x1x16x128xf32>
    tpu.vector_store %arg8[%c0_19, %c0_20, %c0_21, %c0_22], %30 {strides = array<i32>} : memref<1x2x16x128xf32, #tpu.memory_space<vmem>>, vector<1x1x16x128xf32>,
    %c0_23 = arith.constant 0 : index
    %c1 = arith.constant 1 : index
    %c0_24 = arith.constant 0 : index
    %c0_25 = arith.constant 0 : index
    %31 = vector.load %arg5[%c0_23, %c1, %c0_24, %c0_25] : memref<1x2x16x128xf32, #tpu.memory_space<vmem>>, vector<1x1x16x128xf32>
    %32 = vector.shape_cast %31 : vector<1x1x16x128xf32> to vector<16x128xf32>
    %33 = arith.mulf %32, %8 : vector<16x128xf32>
    %c64_i32_26 = arith.constant 64 : i32
    %34 = tpu.dynamic_rotate %32 by %c64_i32_26 dim 1 : vector<16x128xf32>, i32 -> vector<16x128xf32>
    %35 = arith.mulf %34, %12 : vector<16x128xf32>
    %36 = arith.addf %33, %35 : vector<16x128xf32>
    %c0_27 = arith.constant 0 : index
    %c1_28 = arith.constant 1 : index
    %c0_29 = arith.constant 0 : index
    %c0_30 = arith.constant 0 : index
    %37 = vector.load %arg7[%c0_27, %c1_28, %c0_29, %c0_30] : memref<1x2x16x128xf32, #tpu.memory_space<vmem>>, vector<1x1x16x128xf32>
    %38 = vector.shape_cast %37 : vector<1x1x16x128xf32> to vector<16x128xf32>
    %39 = vector.shape_cast %36 : vector<16x128xf32> to vector<1x1x16x128xf32>
    tpu.vector_store %arg7[%c0_27, %c1_28, %c0_29, %c0_30], %39 {strides = array<i32>} : memref<1x2x16x128xf32, #tpu.memory_space<vmem>>, vector<1x1x16x128xf32>,
    %c0_31 = arith.constant 0 : index
    %c1_32 = arith.constant 1 : index
    %c0_33 = arith.constant 0 : index
    %c0_34 = arith.constant 0 : index
    %40 = vector.load %arg6[%c0_31, %c1_32, %c0_33, %c0_34] : memref<1x2x16x128xf32, #tpu.memory_space<vmem>>, vector<1x1x16x128xf32>
    %41 = vector.shape_cast %40 : vector<1x1x16x128xf32> to vector<16x128xf32>
    %42 = arith.mulf %41, %8 : vector<16x128xf32>
    %c64_i32_35 = arith.constant 64 : i32
    %43 = tpu.dynamic_rotate %41 by %c64_i32_35 dim 1 : vector<16x128xf32>, i32 -> vector<16x128xf32>
    %44 = arith.mulf %43, %12 : vector<16x128xf32>
    %45 = arith.addf %42, %44 : vector<16x128xf32>
    %c0_36 = arith.constant 0 : index
    %c1_37 = arith.constant 1 : index
    %c0_38 = arith.constant 0 : index
    %c0_39 = arith.constant 0 : index
    %46 = vector.load %arg8[%c0_36, %c1_37, %c0_38, %c0_39] : memref<1x2x16x128xf32, #tpu.memory_space<vmem>>, vector<1x1x16x128xf32>
    %47 = vector.shape_cast %46 : vector<1x1x16x128xf32> to vector<16x128xf32>
    %48 = vector.shape_cast %45 : vector<16x128xf32> to vector<1x1x16x128xf32>
    tpu.vector_store %arg8[%c0_36, %c1_37, %c0_38, %c0_39], %48 {strides = array<i32>} : memref<1x2x16x128xf32, #tpu.memory_space<vmem>>, vector<1x1x16x128xf32>,
    return
  }
  func.func @transform_0(%arg0: i32, %arg1: i32) -> (i32, i32, i32) {
    %c0_i32 = arith.constant 0 : i32
    %c0_i32_0 = arith.constant 0 : i32
    return %arg0, %arg1, %c0_i32 : i32, i32, i32
  }
  func.func @transform_1(%arg0: i32, %arg1: i32) -> (i32, i32) {
    %c0_i32 = arith.constant 0 : i32
    %c0_i32_0 = arith.constant 0 : i32
    %c0_i32_1 = arith.constant 0 : i32
    return %c0_i32, %c0_i32_0 : i32, i32
  }
  func.func @transform_2(%arg0: i32, %arg1: i32) -> (i32, i32) {
    %c0_i32 = arith.constant 0 : i32
    %c0_i32_0 = arith.constant 0 : i32
    %c0_i32_1 = arith.constant 0 : i32
    return %c0_i32, %c0_i32_0 : i32, i32
  }
  func.func @transform_3(%arg0: i32, %arg1: i32) -> (i32, i32, i32, i32) {
    %c0_i32 = arith.constant 0 : i32
    %c0_i32_0 = arith.constant 0 : i32
    %c0_i32_1 = arith.constant 0 : i32
    return %arg0, %c0_i32, %arg1, %c0_i32_0 : i32, i32, i32, i32
  }
  func.func @transform_4(%arg0: i32, %arg1: i32) -> (i32, i32, i32, i32) {
    %c0_i32 = arith.constant 0 : i32
    %c0_i32_0 = arith.constant 0 : i32
    %c0_i32_1 = arith.constant 0 : i32
    return %arg0, %c0_i32, %arg1, %c0_i32_0 : i32, i32, i32, i32
  }
  func.func @transform_5(%arg0: i32, %arg1: i32) -> (i32, i32, i32, i32) {
    %c0_i32 = arith.constant 0 : i32
    %c0_i32_0 = arith.constant 0 : i32
    %c0_i32_1 = arith.constant 0 : i32
    return %arg0, %c0_i32, %arg1, %c0_i32_0 : i32, i32, i32, i32
  }
  func.func @transform_6(%arg0: i32, %arg1: i32) -> (i32, i32, i32, i32) {
    %c0_i32 = arith.constant 0 : i32
    %c0_i32_0 = arith.constant 0 : i32
    %c0_i32_1 = arith.constant 0 : i32
    return %arg0, %c0_i32, %arg1, %c0_i32_0 : i32, i32, i32, i32
  }
}

</mosaic_0001>

<llo_original>
// kernel: tpu_custom_call.1
$region0: #{tpu_custom_call.1}
  #allocation0 [shape = 'u32[]', space=smem, size = 0x4, offset = 0x4, fixed_abs, tag = 'smem constant byte address 0x4 - core index']
  #allocation1 [shape = 'u32[144,128]{1,0:T(1,128)}', space=vmem, size = 0x12000, scoped, tag = 'internal scratch']
  %s0 = inlined_call_operand.vmem [shape: f32[2,16,1], index: 0, kind: input, shape index: {}]
  %s1 = inlined_call_operand.vmem [shape: f32[1,128], index: 1, kind: input, shape index: {}]
  %s2 = inlined_call_operand.vmem [shape: f32[1,128], index: 2, kind: input, shape index: {}]
  %s3 = inlined_call_operand.hbm [shape: f32[2,2,16,128], index: 3, kind: input, shape index: {}]
  %s4 = inlined_call_operand.hbm [shape: f32[2,2,16,128], index: 4, kind: input, shape index: {}]
  %s5 = inlined_call_operand.hbm [shape: f32[2,2,16,128], index: 5, kind: output, shape index: {0}]
  %s6 = inlined_call_operand.hbm [shape: f32[2,2,16,128], index: 6, kind: output, shape index: {1}]
  %7 = xla_tuple %s5, %s6
  %s8 = sld [smem:[#allocation0]]
  $region69: #{tpu_custom_call.1} parent=0
    _
  %s10 = ssub.s32 1, %s8
  %s11 = scalar_select 0, %s10, %s8
  $region1: #{tpu_custom_call.1} parent=0
    #allocation2 [shape = 'u8[32768]{0}', space=vmem, size = 0x8000, scoped, tag = 'input window, operand 3']
    #allocation3 [shape = 's32[2]{0}', space=sflag, size = 0x8, scoped, tag = 'scoped memory for tpu_custom_call.1']
    #allocation4 [shape = 's32[2]{0}', space=sflag, size = 0x8, scoped, tag = 'scoped memory for tpu_custom_call.1']
    #allocation5 [shape = 'u8[32768]{0}', space=vmem, size = 0x8000, scoped, tag = 'input window, operand 4']
    #allocation6 [shape = 's32[2]{0}', space=sflag, size = 0x8, scoped, tag = 'scoped memory for tpu_custom_call.1']
    #allocation7 [shape = 'u8[32768]{0}', space=vmem, size = 0x8000, scoped, tag = 'output window, operand 0']
    #allocation8 [shape = 'u8[32768]{0}', space=vmem, size = 0x8000, scoped, tag = 'output window, operand 1']
    #allocation9 [shape = 's32[2]{0}', space=sflag, size = 0x8, scoped, tag = 'scoped memory for tpu_custom_call.1']
    %12 = vsyncpa [#allocation3], 0
    %s13 = scalar_lea.sflag [#allocation3], 1
    %14 = vsyncpa %s13, 0
    %15 = vsyncpa [#allocation6], 0
    %s16 = scalar_lea.sflag [#allocation6], 1
    %17 = vsyncpa %s16, 0
    %18 = vsyncpa [#allocation4], 0
    %s19 = scalar_lea.sflag [#allocation4], 1
    %20 = vsyncpa %s19, 0
    %21 = vsyncpa [#allocation9], 0
    %s22 = scalar_lea.sflag [#allocation9], 1
    %23 = vsyncpa %s22, 0
    loop: start=0, step=1, limit=4
    $region2: #{tpu_custom_call.1} parent=1 // loop_pre_header
      _
    $region3: #{tpu_custom_call.1} parent=1 // loop_header
      %s25 = sphi 0, %s29
      %p26 = scmp.ge.s32.totalorder %s25, 4
      %s32 = sphi 0, %s44
      %s33 = sphi 0, %s40
      %s34 = sphi 0, %s32
      %s35 = sphi 0, %s33
      %s36 = sphi 0, %s34
      %s37 = sphi 0, %s35
      %s49 = sphi 0, %s51
      %s52 = sphi 0, %s49
      %s53 = sphi 0, %s52
      %s69 = sphi 0, %s53
      %s73 = sphi 0, %s73
      %s75 = sphi 0, %s73
      %s76 = sphi 0, %s75
      %s90 = sphi 0, %s76
      %s94 = sphi 0, %s94
      %s96 = sphi 0, %s94
      %s97 = sphi 0, %s96
      %s111 = sphi 0, %s97
      %s119 = sphi 0, %s121
      %s122 = sphi 0, %s119
      %s123 = sphi 0, %s122
      %s139 = sphi 0, %s123
      %s147 = sphi 0, %s149
      %s150 = sphi 0, %s147
      %s151 = sphi 0, %s150
      %s167 = sphi 0, %s151
      %s175 = sphi 0, %s177
      %s178 = sphi 0, %s175
      %s179 = sphi 0, %s178
      %s195 = sphi 0, %s179
      %s203 = sphi 0, %s205
      %s206 = sphi 0, %s203
      %s207 = sphi 0, %s206
      %s223 = sphi 0, %s207
    $region4: #{tpu_custom_call.1} parent=1 // loop_header_branch
      %28 = sbr.rel (%p26) target = $region8
    $region5: #{tpu_custom_call.1} parent=1 // loop_body
      %s30 = ssub.s32 %s25, 1
      %s31 = ssub.s32 %s25, 2
      %s38 = sadd.s32 1, %s33
      %p39 = scmp.ge.s32.totalorder %s38, 1
      %s40 = scalar_select %p39, 0, %s38
      %s41 = sadd.s32 1, %s32
      %s42 = scalar_select %p39, %s41, %s32
      %p43 = scmp.ge.s32.totalorder %s42, 2
      %s44 = scalar_select %p43, 0, %s42
      %s45 = ssub.s32 %s32, %s44
      %s46 = ssub.s32 %s33, %s40
      %s47 = sor.u32 %s45, %s46
      %p48 = scmp.eq.s32.totalorder %s47, 0
      %s50 = sadd.s32 %s49, 1
      %s51 = scalar_select %p48, %s49, %s50
      %p54 = pneg %p48
      %p55 = scmp.eq.s32.totalorder %s25, 1
      %p56 = por %p54, %p55
      %p57 = scmp.ne.s32.totalorder %s49, %s52
      %p58 = scmp.eq.s32.totalorder %s25, 0
      %p59 = por %p57, %p58
      %p60 = scmp.ne.s32.totalorder %s49, %s52
      %p61 = scmp.eq.s32.totalorder %s30, 1
      %p62 = por %p60, %p61
      %p63 = scmp.ne.s32.totalorder %s52, %s53
      %p64 = scmp.eq.s32.totalorder %s30, 0
      %p65 = por %p63, %p64
      %p66 = scmp.ne.s32.totalorder %s52, %s53
      %p67 = scmp.eq.s32.totalorder %s31, 1
      %p68 = por %p66, %p67
      %p70 = scmp.ne.s32.totalorder %s53, %s69
      %p71 = scmp.eq.s32.totalorder %s31, 0
      %p72 = por %p70, %p71
      %s74 = sadd.s32 %s73, 1
      %p77 = scmp.eq.s32.totalorder %s25, 1
      %p78 = scmp.ne.s32.totalorder %s73, %s75
      %p79 = scmp.eq.s32.totalorder %s25, 0
      %p80 = por %p78, %p79
      %p81 = scmp.ne.s32.totalorder %s73, %s75
      %p82 = scmp.eq.s32.totalorder %s30, 1
      %p83 = por %p81, %p82
      %p84 = scmp.ne.s32.totalorder %s75, %s76
      %p85 = scmp.eq.s32.totalorder %s30, 0
      %p86 = por %p84, %p85
      %p87 = scmp.ne.s32.totalorder %s75, %s76
      %p88 = scmp.eq.s32.totalorder %s31, 1
      %p89 = por %p87, %p88
      %p91 = scmp.ne.s32.totalorder %s76, %s90
      %p92 = scmp.eq.s32.totalorder %s31, 0
      %p93 = por %p91, %p92
      %s95 = sadd.s32 %s94, 1
      %p98 = scmp.eq.s32.totalorder %s25, 1
      %p99 = scmp.ne.s32.totalorder %s94, %s96
      %p100 = scmp.eq.s32.totalorder %s25, 0
      %p101 = por %p99, %p100
      %p102 = scmp.ne.s32.totalorder %s94, %s96
      %p103 = scmp.eq.s32.totalorder %s30, 1
      %p104 = por %p102, %p103
      %p105 = scmp.ne.s32.totalorder %s96, %s97
      %p106 = scmp.eq.s32.totalorder %s30, 0
      %p107 = por %p105, %p106
      %p108 = scmp.ne.s32.totalorder %s96, %s97
      %p109 = scmp.eq.s32.totalorder %s31, 1
      %p110 = por %p108, %p109
      %p112 = scmp.ne.s32.totalorder %s97, %s111
      %p113 = scmp.eq.s32.totalorder %s31, 0
      %p114 = por %p112, %p113
      %s115 = ssub.s32 %s32, %s44
      %s116 = ssub.s32 %s33, %s40
      %s117 = sor.u32 %s115, %s116
      %p118 = scmp.eq.s32.totalorder %s117, 0
      %s120 = sadd.s32 %s119, 1
      %s121 = scalar_select %p118, %s119, %s120
      %p124 = pneg %p118
      %p125 = scmp.eq.s32.totalorder %s25, 1
      %p126 = por %p124, %p125
      %p127 = scmp.ne.s32.totalorder %s119, %s122
      %p128 = scmp.eq.s32.totalorder %s25, 0
      %p129 = por %p127, %p128
      %p130 = scmp.ne.s32.totalorder %s119, %s122
      %p131 = scmp.eq.s32.totalorder %s30, 1
      %p132 = por %p130, %p131
      %p133 = scmp.ne.s32.totalorder %s122, %s123
      %p134 = scmp.eq.s32.totalorder %s30, 0
      %p135 = por %p133, %p134
      %p136 = scmp.ne.s32.totalorder %s122, %s123
      %p137 = scmp.eq.s32.totalorder %s31, 1
      %p138 = por %p136, %p137
      %p140 = scmp.ne.s32.totalorder %s123, %s139
      %p141 = scmp.eq.s32.totalorder %s31, 0
      %p142 = por %p140, %p141
      %s143 = ssub.s32 %s32, %s44
      %s144 = ssub.s32 %s33, %s40
      %s145 = sor.u32 %s143, %s144
      %p146 = scmp.eq.s32.totalorder %s145, 0
      %s148 = sadd.s32 %s147, 1
      %s149 = scalar_select %p146, %s147, %s148
      %p152 = pneg %p146
      %p153 = scmp.eq.s32.totalorder %s25, 1
      %p154 = por %p152, %p153
      %p155 = scmp.ne.s32.totalorder %s147, %s150
      %p156 = scmp.eq.s32.totalorder %s25, 0
      %p157 = por %p155, %p156
      %p158 = scmp.ne.s32.totalorder %s147, %s150
      %p159 = scmp.eq.s32.totalorder %s30, 1
      %p160 = por %p158, %p159
      %p161 = scmp.ne.s32.totalorder %s150, %s151
      %p162 = scmp.eq.s32.totalorder %s30, 0
      %p163 = por %p161, %p162
      %p164 = scmp.ne.s32.totalorder %s150, %s151
      %p165 = scmp.eq.s32.totalorder %s31, 1
      %p166 = por %p164, %p165
      %p168 = scmp.ne.s32.totalorder %s151, %s167
      %p169 = scmp.eq.s32.totalorder %s31, 0
      %p170 = por %p168, %p169
      %s171 = ssub.s32 %s32, %s44
      %s172 = ssub.s32 %s33, %s40
      %s173 = sor.u32 %s171, %s172
      %p174 = scmp.eq.s32.totalorder %s173, 0
      %s176 = sadd.s32 %s175, 1
      %s177 = scalar_select %p174, %s175, %s176
      %p180 = pneg %p174
      %p181 = scmp.eq.s32.totalorder %s25, 1
      %p182 = por %p180, %p181
      %p183 = scmp.ne.s32.totalorder %s175, %s178
      %p184 = scmp.eq.s32.totalorder %s25, 0
      %p185 = por %p183, %p184
      %p186 = scmp.ne.s32.totalorder %s175, %s178
      %p187 = scmp.eq.s32.totalorder %s30, 1
      %p188 = por %p186, %p187
      %p189 = scmp.ne.s32.totalorder %s178, %s179
      %p190 = scmp.eq.s32.totalorder %s30, 0
      %p191 = por %p189, %p190
      %p192 = scmp.ne.s32.totalorder %s178, %s179
      %p193 = scmp.eq.s32.totalorder %s31, 1
      %p194 = por %p192, %p193
      %p196 = scmp.ne.s32.totalorder %s179, %s195
      %p197 = scmp.eq.s32.totalorder %s31, 0
      %p198 = por %p196, %p197
      %s199 = ssub.s32 %s32, %s44
      %s200 = ssub.s32 %s33, %s40
      %s201 = sor.u32 %s199, %s200
      %p202 = scmp.eq.s32.totalorder %s201, 0
      %s204 = sadd.s32 %s203, 1
      %s205 = scalar_select %p202, %s203, %s204
      %p208 = pneg %p202
      %p209 = scmp.eq.s32.totalorder %s25, 1
      %p210 = por %p208, %p209
      %p211 = scmp.ne.s32.totalorder %s203, %s206
      %p212 = scmp.eq.s32.totalorder %s25, 0
      %p213 = por %p211, %p212
      %p214 = scmp.ne.s32.totalorder %s203, %s206
      %p215 = scmp.eq.s32.totalorder %s30, 1
      %p216 = por %p214, %p215
      %p217 = scmp.ne.s32.totalorder %s206, %s207
      %p218 = scmp.eq.s32.totalorder %s30, 0
      %p219 = por %p217, %p218
      %p220 = scmp.ne.s32.totalorder %s206, %s207
      %p221 = scmp.eq.s32.totalorder %s31, 1
      %p222 = por %p220, %p221
      %p224 = scmp.ne.s32.totalorder %s207, %s223
      %p225 = scmp.eq.s32.totalorder %s31, 0
      %p226 = por %p224, %p225
      %p227 = scmp.le.s32.totalorder 1, %s25
      %p228 = scmp.lt.s32.totalorder %s25, 3
      %p229 = pnand %p227, %p228
      %p230 = pneg %p229
      // Predicated region
      $region9: #{tpu_custom_call.1} parent=5 // pred_check
        _
      $region10: #{tpu_custom_call.1} parent=5 // pred_check_branch
        %232 = sbr.rel (%p229) target = $region12
      $region11: #{tpu_custom_call.1} parent=5 // pred_region
        %s233 = ssub.s32 %s25, 1
        // Predicated region
        $region13: #{tpu_custom_call.1} parent=11 // pred_check
          %p234 = pneg %p86
        $region14: #{tpu_custom_call.1} parent=11 // pred_check_branch
          %236 = sbr.rel (%p234) target = $region16
        $region15: #{tpu_custom_call.1} parent=11 // pred_region
          _
        $region16: #{tpu_custom_call.1} parent=11 // pred_fallthru
          _
        // Predicated region
        $region17: #{tpu_custom_call.1} parent=11 // pred_check
          %p237 = pneg %p107
        $region18: #{tpu_custom_call.1} parent=11 // pred_check_branch
          %239 = sbr.rel (%p237) target = $region20
        $region19: #{tpu_custom_call.1} parent=11 // pred_region
          _
        $region20: #{tpu_custom_call.1} parent=11 // pred_fallthru
          _
      $region12: #{tpu_custom_call.1} parent=5 // pred_fallthru
        _
      %p240 = scmp.lt.s32.totalorder %s25, 2
      // Predicated region
      $region21: #{tpu_custom_call.1} parent=5 // pred_check
        %p241 = pneg %p240
      $region22: #{tpu_custom_call.1} parent=5 // pred_check_branch
        %243 = sbr.rel (%p241) target = $region24
      $region23: #{tpu_custom_call.1} parent=5 // pred_region
        // Predicated region
        $region25: #{tpu_custom_call.1} parent=23 // pred_check
          %p244 = pneg %p59
        $region26: #{tpu_custom_call.1} parent=23 // pred_check_branch
          %246 = sbr.rel (%p244) target = $region28
        $region27: #{tpu_custom_call.1} parent=23 // pred_region
          %s247 = smul.u32 2, %s33
          %p248 = scmp.lt.s32.totalorder %s32, 1
          %s249 = scalar_select %p248, %s32, 1
          %p250 = scmp.lt.s32.totalorder %s247, 1
          %s251 = scalar_select %p250, %s247, 1
          %s252 = smul.addr %s249, 2
          %s253 = sadd.s32 %s251, %s252
          %s254 = smul.addr %s253, 8
          %s255 = scalar_lea.vmem %s0, %s254
          %s256 = smul.u32 2, %s33
        $region28: #{tpu_custom_call.1} parent=23 // pred_fallthru
          _
        // Predicated region
        $region29: #{tpu_custom_call.1} parent=23 // pred_check
          %p257 = pneg %p129
        $region30: #{tpu_custom_call.1} parent=23 // pred_check_branch
          %259 = sbr.rel (%p257) target = $region32
        $region31: #{tpu_custom_call.1} parent=23 // pred_region
          %s260 = sand.u32 %s119, 1
          %s261 = scalar_lea.sflag [#allocation3], %s260
          %s262 = sand.u32 %s119, 1
          %s263 = smul.addr %s262, 32
          %s264 = scalar_lea.vmem [#allocation2], %s263
          %s265 = smul.u32 2, %s33
          %s267 = ssub.s32 512, 512
          %268 = vsyncadd %s261, %s267
          %s269 = smul.addr %s32, 4
          %s270 = sadd.s32 %s265, %s269
          %s271 = smul.addr %s270, 128
          %s272 = scalar_lea.hbm %s3, %s271
          %s273 = sshll.u32 %s264, 4
          %s274 = int_to_ptr.vmem [resolvable:$true] %s273
          %279 = dma.hbm_to_vmem [thread:$0]  %s272, 512, %s274, %s261, 128, 128, 8
        $region32: #{tpu_custom_call.1} parent=23 // pred_fallthru
          _
        // Predicated region
        $region33: #{tpu_custom_call.1} parent=23 // pred_check
          %p280 = pneg %p157
        $region34: #{tpu_custom_call.1} parent=23 // pred_check_branch
          %282 = sbr.rel (%p280) target = $region36
        $region35: #{tpu_custom_call.1} parent=23 // pred_region
          %s283 = sand.u32 %s147, 1
          %s284 = scalar_lea.sflag [#allocation6], %s283
          %s285 = sand.u32 %s147, 1
          %s286 = smul.addr %s285, 32
          %s287 = scalar_lea.vmem [#allocation5], %s286
          %s288 = smul.u32 2, %s33
          %s290 = ssub.s32 512, 512
          %291 = vsyncadd %s284, %s290
          %s292 = smul.addr %s32, 4
          %s293 = sadd.s32 %s288, %s292
          %s294 = smul.addr %s293, 128
          %s295 = scalar_lea.hbm %s4, %s294
          %s296 = sshll.u32 %s287, 4
          %s297 = int_to_ptr.vmem [resolvable:$true] %s296
          %302 = dma.hbm_to_vmem [thread:$0]  %s295, 512, %s297, %s284, 128, 128, 8
        $region36: #{tpu_custom_call.1} parent=23 // pred_fallthru
          _
      $region24: #{tpu_custom_call.1} parent=5 // pred_fallthru
        _
      %p303 = scmp.le.s32.totalorder 1, %s25
      %p304 = scmp.lt.s32.totalorder %s25, 3
      %p305 = pnand %p303, %p304
      %p306 = pneg %p305
      // Predicated region
      $region37: #{tpu_custom_call.1} parent=5 // pred_check
        _
      $region38: #{tpu_custom_call.1} parent=5 // pred_check_branch
        %308 = sbr.rel (%p305) target = $region40
      $region39: #{tpu_custom_call.1} parent=5 // pred_region
        %s309 = ssub.s32 %s25, 1
        %s310 = sand.u32 %s122, 1
        %s311 = scalar_lea.sflag [#allocation3], %s310
        %s312 = sand.u32 %s122, 1
        %s313 = smul.addr %s312, 32
        %s314 = scalar_lea.vmem [#allocation2], %s313
        // Predicated region
        $region41: #{tpu_custom_call.1} parent=39 // pred_check
          %p315 = pneg %p135
        $region42: #{tpu_custom_call.1} parent=39 // pred_check_branch
          %317 = sbr.rel (%p315) target = $region44
        $region43: #{tpu_custom_call.1} parent=39 // pred_region
          %318 = dma.done %s311, 512
        $region44: #{tpu_custom_call.1} parent=39 // pred_fallthru
          _
        %s319 = sand.u32 %s150, 1
        %s320 = scalar_lea.sflag [#allocation6], %s319
        %s321 = sand.u32 %s150, 1
        %s322 = smul.addr %s321, 32
        %s323 = scalar_lea.vmem [#allocation5], %s322
        // Predicated region
        $region45: #{tpu_custom_call.1} parent=39 // pred_check
          %p324 = pneg %p163
        $region46: #{tpu_custom_call.1} parent=39 // pred_check_branch
          %326 = sbr.rel (%p324) target = $region48
        $region47: #{tpu_custom_call.1} parent=39 // pred_region
          %327 = dma.done %s320, 512
        $region48: #{tpu_custom_call.1} parent=39 // pred_fallthru
          _
        %s328 = smul.u32 2, %s35
        %p329 = scmp.lt.s32.totalorder %s34, 1
        %s330 = scalar_select %p329, %s34, 1
        %p331 = scmp.lt.s32.totalorder %s328, 1
        %s332 = scalar_select %p331, %s328, 1
        %s333 = smul.addr %s330, 2
        %s334 = sadd.s32 %s332, %s333
        %s335 = smul.addr %s334, 8
        %s336 = scalar_lea.vmem %s0, %s335
        %p337 = pneg %p65
        %p338 = pneg %p62
        %p339 = pneg %p86
        %p340 = pneg %p83
        %p341 = pneg %p107
        %p342 = pneg %p104
        %s343 = sand.u32 %s122, 1
        %s344 = scalar_lea.sflag [#allocation3], %s343
        %s345 = sand.u32 %s122, 1
        %s346 = smul.addr %s345, 32
        %s347 = scalar_lea.vmem [#allocation2], %s346
        %p348 = pneg %p135
        %p349 = pneg %p132
        %s350 = sand.u32 %s150, 1
        %s351 = scalar_lea.sflag [#allocation6], %s350
        %s352 = sand.u32 %s150, 1
        %s353 = smul.addr %s352, 32
        %s354 = scalar_lea.vmem [#allocation5], %s353
        %p355 = pneg %p163
        %p356 = pneg %p160
        %p357 = pneg %p191
        %p358 = pneg %p188
        %s359 = sand.u32 %s178, 1
        %s360 = scalar_lea.sflag [#allocation4], %s359
        %s361 = sand.u32 %s178, 1
        %s362 = smul.addr %s361, 32
        %s363 = scalar_lea.vmem [#allocation7], %s362
        %p364 = pneg %p219
        %p365 = pneg %p216
        %s366 = sand.u32 %s206, 1
        %s367 = scalar_lea.sflag [#allocation9], %s366
        %s368 = sand.u32 %s206, 1
        %s369 = smul.addr %s368, 32
        %s370 = scalar_lea.vmem [#allocation8], %s369
        %s371 = smul.u32 2, %s35
        %p372 = scmp.lt.s32.totalorder %s34, 1
        %s373 = scalar_select %p372, %s34, 1
        %p374 = scmp.lt.s32.totalorder %s371, 1
        %s375 = scalar_select %p374, %s371, 1
        %s376 = smul.addr %s373, 2
        %s377 = sadd.s32 %s375, %s376
        %s378 = smul.addr %s377, 8
        %s379 = scalar_lea.vmem %s0, %s378
        %s380 = smul.u32 2, %s35
        %s381 = smul.u32 2, %s35
        %s382 = smul.u32 2, %s35
        %s383 = smul.u32 2, %s35
        %s384 = smul.u32 2, %s35
        %v385 = vld [vmem:[%s379] sm:$0xff]
        %v386 = vld [vmem:[%s379 + $0x8] sm:$0xff]
        %v387 = vld [vmem:[%s1] sm:$0x1]
        %389 = vset.pattern.permute.xlu0 0
        %390 = vperm.xlu0 %389, %v385
        %v391 = vpop.permute.xlu0 %390
        %394 = vset.pattern.permute.xlu0 0
        %395 = vperm.xlu0 %394, %v386
        %v396 = vpop.permute.xlu0 %395
        %v399 = vlaneseq
        %v400 = vshrl.u32 %v399, 7
        %v401 = vsub.s32 0, %v400
        %v402 = vrot.slane %v387, %v401
        %v404 = vmul.f32 %v391, %v402
        %v405 = vmul.f32 %v396, %v402
        %v406 = vand.u32 2147483647, %v404
        %vm407 = vcmp.le.f32.partialorder %v406, 0.7853982
        %vm408 = vcmp.lt.s32.totalorder %v404, 0
        %v409 = vand.u32 %v404, 2139095040
        %v410 = vshrl.u32 %v409, 23
        %v411 = vsub.s32 %v410, 127
        %v412 = vand.u32 2147483647, %v404
        %v413 = vand.u32 %v412, 8388607
        %v414 = vor.u32 %v413, 8388608
        %v415 = vsub.s32 0, %v414
        %v416 = vadd.s32 %v411, 1
        %vm417 = vcmp.gt.s32.totalorder %v416, 0
        %v418 = vsel %vm417, %v416, 0
        %v419 = vshrl.u32 %v418, 5
        %v420 = vand.u32 %v418, 31
        %v421 = vsub.s32 32, %v420
        %v422 = vshrl.u32 683565275, %v421
        %v423 = vshll.u32 683565275, %v420
        %v424 = vshrl.u32 2475754826, %v421
        %v425 = vor.u32 %v423, %v424
        %v426 = vshll.u32 2475754826, %v420
        %v427 = vshrl.u32 2131351028, %v421
        %v428 = vor.u32 %v426, %v427
        %v429 = vshll.u32 2131351028, %v420
        %v430 = vshrl.u32 2102212464, %v421
        %v431 = vor.u32 %v429, %v430
        %v432 = vshll.u32 2102212464, %v420
        %v433 = vshrl.u32 920167782, %v421
        %v434 = vor.u32 %v432, %v433
        %v435 = vshll.u32 920167782, %v420
        %v436 = vshrl.u32 1326507024, %v421
        %v437 = vor.u32 %v435, %v436
        %vm438 = vcmp.lt.s32.totalorder %v419, 1
        %vm439 = vcmp.lt.s32.totalorder %v419, 2
        %vm440 = vcmp.lt.s32.totalorder %v419, 3
        %vm441 = vcmp.lt.s32.totalorder %v419, 4
        %v442 = vsel %vm438, %v422, %v425
        %v443 = vsel %vm441, %v431, 2102212464
        %v444 = vsel %vm440, %v428, %v443
        %v445 = vsel %vm439, %v442, %v444
        %v446 = vsel %vm438, %v425, %v428
        %v447 = vsel %vm441, %v434, 920167782
        %v448 = vsel %vm440, %v431, %v447
        %v449 = vsel %vm439, %v446, %v448
        %v450 = vsel %vm438, %v428, %v431
        %v451 = vsel %vm441, %v437, 1326507024
        %v452 = vsel %vm440, %v434, %v451
        %v453 = vsel %vm439, %v450, %v452
        %v454 = vshll.u32 %v414, 8
        %v455 = vmul.u32.u64.compose %v454, %v453
        %v456 = vextract.low.u32 %v455
        %v457 = vextract.high.u32 %v455
        %v458 = vmul.u32.u64.compose %v454, %v449
        %v459 = vextract.low.u32 %v458
        %v460 = vextract.high.u32 %v458
        %v461 = vmul.u32 %v454, %v445
        %v462 = vadd.s32 %v457, %v459
        %vm463 = vc.u32 %v457, %v459
        %v464 = vadd.s32 %v460, 1
        %v465 = vsel %vm463, %v464, %v460
        %v466 = vadd.s32 %v461, %v465
        %v467 = vadd.s32 %v466, 536870912
        %v468 = vshrl.u32 %v467, 30
        %v469 = vshll.u32 %v468, 30
        %v470 = vsub.s32 %v466, %v469
        %vm471 = vcmp.lt.s32.totalorder %v470, 0
        %v472 = vsub.s32 0, %v470
        %v473 = vsel %vm471, %v472, %v470
        %v474 = vclz %v473
        %v475 = vsub.s32 %v474, 2
        %vm476 = vcmp.gt.s32.totalorder 0, %v475
        %v477 = vsel %vm476, 0, %v475
        %v478 = vsub.s32 32, %v477
        %v479 = vshll.u32 %v470, %v477
        %v480 = vshrl.u32 %v462, %v478
        %v481 = vor.u32 %v479, %v480
        %v482 = vsub.s32 4294967266, %v477
        %v483 = vadd.s32 %v482, 127
        %v484 = vshll.u32 %v483, 23
        %v485 = vor.u32 4788187, %v484
        %v486 = vand.u32 2147483647, %v485
        %v488 = vcvt.s32.f32 %v481
        %v489 = vmul.f32 %v488, %v486
        %v490 = vxor.u32 %v489, 2147483648
        %v491 = vsel %vm408, %v490, %v489
        %v492 = vsub.s32 4, %v468
        %v493 = vsel %vm408, %v492, %v468
        %v494 = vsel %vm407, %v404, %v491
        %v495 = vsel %vm407, 0, %v493
        %v496 = vcosq.f32.pop %v494
        %v497 = vsinq.f32.pop %v494
        %vm498 = vweird.f32 %v404
        %v499 = vand.u32 %v495, 3
        %vm500 = vcmp.lt.s32.totalorder %v499, 2
        %vm501 = vcmp.eq.s32.totalorder %v499, 0
        %v502 = vxor.u32 %v497, 2147483648
        %v503 = vsel %vm501, %v496, %v502
        %vm504 = vcmp.eq.s32.totalorder %v499, 2
        %v505 = vxor.u32 %v496, 2147483648
        %v506 = vsel %vm504, %v505, %v497
        %v507 = vsel %vm500, %v503, %v506
        %v508 = vsel %vm498, nan, %v507
        %v509 = vand.u32 2147483647, %v405
        %vm510 = vcmp.le.f32.partialorder %v509, 0.7853982
        %vm511 = vcmp.lt.s32.totalorder %v405, 0
        %v512 = vand.u32 %v405, 2139095040
        %v513 = vshrl.u32 %v512, 23
        %v514 = vsub.s32 %v513, 127
        %v515 = vand.u32 2147483647, %v405
        %v516 = vand.u32 %v515, 8388607
        %v517 = vor.u32 %v516, 8388608
        %v518 = vsub.s32 0, %v517
        %v519 = vadd.s32 %v514, 1
        %vm520 = vcmp.gt.s32.totalorder %v519, 0
        %v521 = vsel %vm520, %v519, 0
        %v522 = vshrl.u32 %v521, 5
        %v523 = vand.u32 %v521, 31
        %v524 = vsub.s32 32, %v523
        %v525 = vshrl.u32 683565275, %v524
        %v526 = vshll.u32 683565275, %v523
        %v527 = vshrl.u32 2475754826, %v524
        %v528 = vor.u32 %v526, %v527
        %v529 = vshll.u32 2475754826, %v523
        %v530 = vshrl.u32 2131351028, %v524
        %v531 = vor.u32 %v529, %v530
        %v532 = vshll.u32 2131351028, %v523
        %v533 = vshrl.u32 2102212464, %v524
        %v534 = vor.u32 %v532, %v533
        %v535 = vshll.u32 2102212464, %v523
        %v536 = vshrl.u32 920167782, %v524
        %v537 = vor.u32 %v535, %v536
        %v538 = vshll.u32 920167782, %v523
        %v539 = vshrl.u32 1326507024, %v524
        %v540 = vor.u32 %v538, %v539
        %vm541 = vcmp.lt.s32.totalorder %v522, 1
        %vm542 = vcmp.lt.s32.totalorder %v522, 2
        %vm543 = vcmp.lt.s32.totalorder %v522, 3
        %vm544 = vcmp.lt.s32.totalorder %v522, 4
        %v545 = vsel %vm541, %v525, %v528
        %v546 = vsel %vm544, %v534, 2102212464
        %v547 = vsel %vm543, %v531, %v546
        %v548 = vsel %vm542, %v545, %v547
        %v549 = vsel %vm541, %v528, %v531
        %v550 = vsel %vm544, %v537, 920167782
        %v551 = vsel %vm543, %v534, %v550
        %v552 = vsel %vm542, %v549, %v551
        %v553 = vsel %vm541, %v531, %v534
        %v554 = vsel %vm544, %v540, 1326507024
        %v555 = vsel %vm543, %v537, %v554
        %v556 = vsel %vm542, %v553, %v555
        %v557 = vshll.u32 %v517, 8
        %v558 = vmul.u32.u64.compose %v557, %v556
        %v559 = vextract.low.u32 %v558
        %v560 = vextract.high.u32 %v558
        %v561 = vmul.u32.u64.compose %v557, %v552
        %v562 = vextract.low.u32 %v561
        %v563 = vextract.high.u32 %v561
        %v564 = vmul.u32 %v557, %v548
        %v565 = vadd.s32 %v560, %v562
        %vm566 = vc.u32 %v560, %v562
        %v567 = vadd.s32 %v563, 1
        %v568 = vsel %vm566, %v567, %v563
        %v569 = vadd.s32 %v564, %v568
        %v570 = vadd.s32 %v569, 536870912
        %v571 = vshrl.u32 %v570, 30
        %v572 = vshll.u32 %v571, 30
        %v573 = vsub.s32 %v569, %v572
        %vm574 = vcmp.lt.s32.totalorder %v573, 0
        %v575 = vsub.s32 0, %v573
        %v576 = vsel %vm574, %v575, %v573
        %v577 = vclz %v576
        %v578 = vsub.s32 %v577, 2
        %vm579 = vcmp.gt.s32.totalorder 0, %v578
        %v580 = vsel %vm579, 0, %v578
        %v581 = vsub.s32 32, %v580
        %v582 = vshll.u32 %v573, %v580
        %v583 = vshrl.u32 %v565, %v581
        %v584 = vor.u32 %v582, %v583
        %v585 = vsub.s32 4294967266, %v580
        %v586 = vadd.s32 %v585, 127
        %v587 = vshll.u32 %v586, 23
        %v588 = vor.u32 4788187, %v587
        %v589 = vand.u32 2147483647, %v588
        %v591 = vcvt.s32.f32 %v584
        %v592 = vmul.f32 %v591, %v589
        %v593 = vxor.u32 %v592, 2147483648
        %v594 = vsel %vm511, %v593, %v592
        %v595 = vsub.s32 4, %v571
        %v596 = vsel %vm511, %v595, %v571
        %v597 = vsel %vm510, %v405, %v594
        %v598 = vsel %vm510, 0, %v596
        %v599 = vcosq.f32.pop %v597
        %v600 = vsinq.f32.pop %v597
        %vm601 = vweird.f32 %v405
        %v602 = vand.u32 %v598, 3
        %vm603 = vcmp.lt.s32.totalorder %v602, 2
        %vm604 = vcmp.eq.s32.totalorder %v602, 0
        %v605 = vxor.u32 %v600, 2147483648
        %v606 = vsel %vm604, %v599, %v605
        %vm607 = vcmp.eq.s32.totalorder %v602, 2
        %v608 = vxor.u32 %v599, 2147483648
        %v609 = vsel %vm607, %v608, %v600
        %v610 = vsel %vm603, %v606, %v609
        %v611 = vsel %vm601, nan, %v610
        %v612 = vmul.f32 %v508, 1.040833
        %v613 = vmul.f32 %v611, 1.040833
        %v614 = vand.u32 2147483647, %v404
        %vm615 = vcmp.le.f32.partialorder %v614, 0.7853982
        %vm616 = vcmp.lt.s32.totalorder %v404, 0
        %v617 = vand.u32 %v404, 2139095040
        %v618 = vshrl.u32 %v617, 23
        %v619 = vsub.s32 %v618, 127
        %v620 = vand.u32 2147483647, %v404
        %v621 = vand.u32 %v620, 8388607
        %v622 = vor.u32 %v621, 8388608
        %v623 = vsub.s32 0, %v622
        %v624 = vadd.s32 %v619, 1
        %vm625 = vcmp.gt.s32.totalorder %v624, 0
        %v626 = vsel %vm625, %v624, 0
        %v627 = vshrl.u32 %v626, 5
        %v628 = vand.u32 %v626, 31
        %v629 = vsub.s32 32, %v628
        %v630 = vshrl.u32 683565275, %v629
        %v631 = vshll.u32 683565275, %v628
        %v632 = vshrl.u32 2475754826, %v629
        %v633 = vor.u32 %v631, %v632
        %v634 = vshll.u32 2475754826, %v628
        %v635 = vshrl.u32 2131351028, %v629
        %v636 = vor.u32 %v634, %v635
        %v637 = vshll.u32 2131351028, %v628
        %v638 = vshrl.u32 2102212464, %v629
        %v639 = vor.u32 %v637, %v638
        %v640 = vshll.u32 2102212464, %v628
        %v641 = vshrl.u32 920167782, %v629
        %v642 = vor.u32 %v640, %v641
        %v643 = vshll.u32 920167782, %v628
        %v644 = vshrl.u32 1326507024, %v629
        %v645 = vor.u32 %v643, %v644
        %vm646 = vcmp.lt.s32.totalorder %v627, 1
        %vm647 = vcmp.lt.s32.totalorder %v627, 2
        %vm648 = vcmp.lt.s32.totalorder %v627, 3
        %vm649 = vcmp.lt.s32.totalorder %v627, 4
        %v650 = vsel %vm646, %v630, %v633
        %v651 = vsel %vm649, %v639, 2102212464
        %v652 = vsel %vm648, %v636, %v651
        %v653 = vsel %vm647, %v650, %v652
        %v654 = vsel %vm646, %v633, %v636
        %v655 = vsel %vm649, %v642, 920167782
        %v656 = vsel %vm648, %v639, %v655
        %v657 = vsel %vm647, %v654, %v656
        %v658 = vsel %vm646, %v636, %v639
        %v659 = vsel %vm649, %v645, 1326507024
        %v660 = vsel %vm648, %v642, %v659
        %v661 = vsel %vm647, %v658, %v660
        %v662 = vshll.u32 %v622, 8
        %v663 = vmul.u32.u64.compose %v662, %v661
        %v664 = vextract.low.u32 %v663
        %v665 = vextract.high.u32 %v663
        %v666 = vmul.u32.u64.compose %v662, %v657
        %v667 = vextract.low.u32 %v666
        %v668 = vextract.high.u32 %v666
        %v669 = vmul.u32 %v662, %v653
        %v670 = vadd.s32 %v665, %v667
        %vm671 = vc.u32 %v665, %v667
        %v672 = vadd.s32 %v668, 1
        %v673 = vsel %vm671, %v672, %v668
        %v674 = vadd.s32 %v669, %v673
        %v675 = vadd.s32 %v674, 536870912
        %v676 = vshrl.u32 %v675, 30
        %v677 = vshll.u32 %v676, 30
        %v678 = vsub.s32 %v674, %v677
        %vm679 = vcmp.lt.s32.totalorder %v678, 0
        %v680 = vsub.s32 0, %v678
        %v681 = vsel %vm679, %v680, %v678
        %v682 = vclz %v681
        %v683 = vsub.s32 %v682, 2
        %vm684 = vcmp.gt.s32.totalorder 0, %v683
        %v685 = vsel %vm684, 0, %v683
        %v686 = vsub.s32 32, %v685
        %v687 = vshll.u32 %v678, %v685
        %v688 = vshrl.u32 %v670, %v686
        %v689 = vor.u32 %v687, %v688
        %v690 = vsub.s32 4294967266, %v685
        %v691 = vadd.s32 %v690, 127
        %v692 = vshll.u32 %v691, 23
        %v693 = vor.u32 4788187, %v692
        %v694 = vand.u32 2147483647, %v693
        %v696 = vcvt.s32.f32 %v689
        %v697 = vmul.f32 %v696, %v694
        %v698 = vxor.u32 %v697, 2147483648
        %v699 = vsel %vm616, %v698, %v697
        %v700 = vsub.s32 4, %v676
        %v701 = vsel %vm616, %v700, %v676
        %v702 = vsel %vm615, %v404, %v699
        %v703 = vsel %vm615, 0, %v701
        %v704 = vcosq.f32.pop %v702
        %v705 = vsinq.f32.pop %v702
        %vm706 = vweird.f32 %v404
        %v707 = vadd.s32 %v703, 3
        %v708 = vand.u32 %v707, 3
        %vm709 = vcmp.lt.s32.totalorder %v708, 2
        %vm710 = vcmp.eq.s32.totalorder %v708, 0
        %v711 = vxor.u32 %v705, 2147483648
        %v712 = vsel %vm710, %v704, %v711
        %vm713 = vcmp.eq.s32.totalorder %v708, 2
        %v714 = vxor.u32 %v704, 2147483648
        %v715 = vsel %vm713, %v714, %v705
        %v716 = vsel %vm709, %v712, %v715
        %v717 = vsel %vm706, nan, %v716
        %v718 = vand.u32 2147483647, %v405
        %vm719 = vcmp.le.f32.partialorder %v718, 0.7853982
        %vm720 = vcmp.lt.s32.totalorder %v405, 0
        %v721 = vand.u32 %v405, 2139095040
        %v722 = vshrl.u32 %v721, 23
        %v723 = vsub.s32 %v722, 127
        %v724 = vand.u32 2147483647, %v405
        %v725 = vand.u32 %v724, 8388607
        %v726 = vor.u32 %v725, 8388608
        %v727 = vsub.s32 0, %v726
        %v728 = vadd.s32 %v723, 1
        %vm729 = vcmp.gt.s32.totalorder %v728, 0
        %v730 = vsel %vm729, %v728, 0
        %v731 = vshrl.u32 %v730, 5
        %v732 = vand.u32 %v730, 31
        %v733 = vsub.s32 32, %v732
        %v734 = vshrl.u32 683565275, %v733
        %v735 = vshll.u32 683565275, %v732
        %v736 = vshrl.u32 2475754826, %v733
        %v737 = vor.u32 %v735, %v736
        %v738 = vshll.u32 2475754826, %v732
        %v739 = vshrl.u32 2131351028, %v733
        %v740 = vor.u32 %v738, %v739
        %v741 = vshll.u32 2131351028, %v732
        %v742 = vshrl.u32 2102212464, %v733
        %v743 = vor.u32 %v741, %v742
        %v744 = vshll.u32 2102212464, %v732
        %v745 = vshrl.u32 920167782, %v733
        %v746 = vor.u32 %v744, %v745
        %v747 = vshll.u32 920167782, %v732
        %v748 = vshrl.u32 1326507024, %v733
        %v749 = vor.u32 %v747, %v748
        %vm750 = vcmp.lt.s32.totalorder %v731, 1
        %vm751 = vcmp.lt.s32.totalorder %v731, 2
        %vm752 = vcmp.lt.s32.totalorder %v731, 3
        %vm753 = vcmp.lt.s32.totalorder %v731, 4
        %v754 = vsel %vm750, %v734, %v737
        %v755 = vsel %vm753, %v743, 2102212464
        %v756 = vsel %vm752, %v740, %v755
        %v757 = vsel %vm751, %v754, %v756
        %v758 = vsel %vm750, %v737, %v740
        %v759 = vsel %vm753, %v746, 920167782
        %v760 = vsel %vm752, %v743, %v759
        %v761 = vsel %vm751, %v758, %v760
        %v762 = vsel %vm750, %v740, %v743
        %v763 = vsel %vm753, %v749, 1326507024
        %v764 = vsel %vm752, %v746, %v763
        %v765 = vsel %vm751, %v762, %v764
        %v766 = vshll.u32 %v726, 8
        %v767 = vmul.u32.u64.compose %v766, %v765
        %v768 = vextract.low.u32 %v767
        %v769 = vextract.high.u32 %v767
        %v770 = vmul.u32.u64.compose %v766, %v761
        %v771 = vextract.low.u32 %v770
        %v772 = vextract.high.u32 %v770
        %v773 = vmul.u32 %v766, %v757
        %v774 = vadd.s32 %v769, %v771
        %vm775 = vc.u32 %v769, %v771
        %v776 = vadd.s32 %v772, 1
        %v777 = vsel %vm775, %v776, %v772
        %v778 = vadd.s32 %v773, %v777
        %v779 = vadd.s32 %v778, 536870912
        %v780 = vshrl.u32 %v779, 30
        %v781 = vshll.u32 %v780, 30
        %v782 = vsub.s32 %v778, %v781
        %vm783 = vcmp.lt.s32.totalorder %v782, 0
        %v784 = vsub.s32 0, %v782
        %v785 = vsel %vm783, %v784, %v782
        %v786 = vclz %v785
        %v787 = vsub.s32 %v786, 2
        %vm788 = vcmp.gt.s32.totalorder 0, %v787
        %v789 = vsel %vm788, 0, %v787
        %v790 = vsub.s32 32, %v789
        %v791 = vshll.u32 %v782, %v789
        %v792 = vshrl.u32 %v774, %v790
        %v793 = vor.u32 %v791, %v792
        %v794 = vsub.s32 4294967266, %v789
        %v795 = vadd.s32 %v794, 127
        %v796 = vshll.u32 %v795, 23
        %v797 = vor.u32 4788187, %v796
        %v798 = vand.u32 2147483647, %v797
        %v800 = vcvt.s32.f32 %v793
        %v801 = vmul.f32 %v800, %v798
        %v802 = vxor.u32 %v801, 2147483648
        %v803 = vsel %vm720, %v802, %v801
        %v804 = vsub.s32 4, %v780
        %v805 = vsel %vm720, %v804, %v780
        %v806 = vsel %vm719, %v405, %v803
        %v807 = vsel %vm719, 0, %v805
        %v808 = vcosq.f32.pop %v806
        %v809 = vsinq.f32.pop %v806
        %vm810 = vweird.f32 %v405
        %v811 = vadd.s32 %v807, 3
        %v812 = vand.u32 %v811, 3
        %vm813 = vcmp.lt.s32.totalorder %v812, 2
        %vm814 = vcmp.eq.s32.totalorder %v812, 0
        %v815 = vxor.u32 %v809, 2147483648
        %v816 = vsel %vm814, %v808, %v815
        %vm817 = vcmp.eq.s32.totalorder %v812, 2
        %v818 = vxor.u32 %v808, 2147483648
        %v819 = vsel %vm817, %v818, %v809
        %v820 = vsel %vm813, %v816, %v819
        %v821 = vsel %vm810, nan, %v820
        %v822 = vld [vmem:[%s2] sm:$0x1]
        %v824 = vlaneseq
        %v825 = vshrl.u32 %v824, 7
        %v826 = vsub.s32 0, %v825
        %v827 = vrot.slane %v822, %v826
        %v829 = vmul.f32 %v717, %v827
        %v830 = vmul.f32 %v821, %v827
        %v831 = vld [vmem:[%s314] sm:$0xff]
        %v832 = vld [vmem:[%s314 + $0x8] sm:$0xff]
        %v833 = vmul.f32 %v831, %v612
        %v834 = vmul.f32 %v832, %v613
        %835 = vrot.lane.b32.xlu0 %v831, 64
        %v836 = vpop.permute.xlu0 %835
        %837 = vrot.lane.b32.xlu0 %v832, 64
        %v838 = vpop.permute.xlu0 %837
        %v839 = vmul.f32 %v836, %v829
        %v840 = vmul.f32 %v838, %v830
        %v841 = vadd.f32 %v833, %v839
        %v842 = vadd.f32 %v834, %v840
        %843 = vst [vmem:[%s363] sm:$0xff] %v841
        %844 = vst [vmem:[%s363 + $0x8] sm:$0xff] %v842
        %v845 = vld [vmem:[%s323] sm:$0xff]
        %v846 = vld [vmem:[%s323 + $0x8] sm:$0xff]
        %v847 = vmul.f32 %v845, %v612
        %v848 = vmul.f32 %v846, %v613
        %849 = vrot.lane.b32.xlu0 %v845, 64
        %v850 = vpop.permute.xlu0 %849
        %851 = vrot.lane.b32.xlu0 %v846, 64
        %v852 = vpop.permute.xlu0 %851
        %v853 = vmul.f32 %v850, %v829
        %v854 = vmul.f32 %v852, %v830
        %v855 = vadd.f32 %v847, %v853
        %v856 = vadd.f32 %v848, %v854
        %857 = vst [vmem:[%s370] sm:$0xff] %v855
        %858 = vst [vmem:[%s370 + $0x8] sm:$0xff] %v856
        %s859 = scalar_lea.vmem %s314, 16 [#allocation2]
        %v860 = vld [vmem:[%s859] sm:$0xff]
        %v861 = vld [vmem:[%s859 + $0x8] sm:$0xff]
        %v862 = vmul.f32 %v860, %v612
        %v863 = vmul.f32 %v861, %v613
        %864 = vrot.lane.b32.xlu0 %v860, 64
        %v865 = vpop.permute.xlu0 %864
        %866 = vrot.lane.b32.xlu0 %v861, 64
        %v867 = vpop.permute.xlu0 %866
        %v868 = vmul.f32 %v865, %v829
        %v869 = vmul.f32 %v867, %v830
        %v870 = vadd.f32 %v862, %v868
        %v871 = vadd.f32 %v863, %v869
        %s872 = scalar_lea.vmem %s363, 16 [#allocation7]
        %873 = vst [vmem:[%s872] sm:$0xff] %v870
        %874 = vst [vmem:[%s872 + $0x8] sm:$0xff] %v871
        %s875 = scalar_lea.vmem %s323, 16 [#allocation5]
        %v876 = vld [vmem:[%s875] sm:$0xff]
        %v877 = vld [vmem:[%s875 + $0x8] sm:$0xff]
        %v878 = vmul.f32 %v876, %v612
        %v879 = vmul.f32 %v877, %v613
        %880 = vrot.lane.b32.xlu0 %v876, 64
        %v881 = vpop.permute.xlu0 %880
        %882 = vrot.lane.b32.xlu0 %v877, 64
        %v883 = vpop.permute.xlu0 %882
        %v884 = vmul.f32 %v881, %v829
        %v885 = vmul.f32 %v883, %v830
        %v886 = vadd.f32 %v878, %v884
        %v887 = vadd.f32 %v879, %v885
        %s888 = scalar_lea.vmem %s370, 16 [#allocation8]
        %889 = vst [vmem:[%s888] sm:$0xff] %v886
        %890 = vst [vmem:[%s888 + $0x8] sm:$0xff] %v887
        %s891 = sand.u32 %s178, 1
        %s892 = scalar_lea.sflag [#allocation4], %s891
        %s893 = sand.u32 %s178, 1
        %s894 = smul.addr %s893, 32
        %s895 = scalar_lea.vmem [#allocation7], %s894
        %s896 = sand.u32 %s206, 1
        %s897 = scalar_lea.sflag [#allocation9], %s896
        %s898 = sand.u32 %s206, 1
        %s899 = smul.addr %s898, 32
        %s900 = scalar_lea.vmem [#allocation8], %s899
        // Predicated region
        $region49: #{tpu_custom_call.1} parent=39 // pred_check
          %p901 = pneg %p188
        $region50: #{tpu_custom_call.1} parent=39 // pred_check_branch
          %903 = sbr.rel (%p901) target = $region52
        $region51: #{tpu_custom_call.1} parent=39 // pred_region
          %s904 = smul.u32 2, %s35
          %s906 = ssub.s32 512, 512
          %907 = vsyncadd %s892, %s906
          %s908 = smul.addr %s34, 4
          %s909 = sadd.s32 %s904, %s908
          %s910 = smul.addr %s909, 128
          %s911 = scalar_lea.hbm %s5, %s910
          %s912 = sshll.u32 %s895, 4
          %s913 = int_to_ptr.vmem [resolvable:$true] %s912
          %918 = dma.vmem_to_hbm [thread:$0]  %s913, 512, %s911, %s892, 128, 128, 8
        $region52: #{tpu_custom_call.1} parent=39 // pred_fallthru
          _
        // Predicated region
        $region53: #{tpu_custom_call.1} parent=39 // pred_check
          %p919 = pneg %p216
        $region54: #{tpu_custom_call.1} parent=39 // pred_check_branch
          %921 = sbr.rel (%p919) target = $region56
        $region55: #{tpu_custom_call.1} parent=39 // pred_region
          %s922 = smul.u32 2, %s35
          %s924 = ssub.s32 512, 512
          %925 = vsyncadd %s897, %s924
          %s926 = smul.addr %s34, 4
          %s927 = sadd.s32 %s922, %s926
          %s928 = smul.addr %s927, 128
          %s929 = scalar_lea.hbm %s6, %s928
          %s930 = sshll.u32 %s900, 4
          %s931 = int_to_ptr.vmem [resolvable:$true] %s930
          %936 = dma.vmem_to_hbm [thread:$0]  %s931, 512, %s929, %s897, 128, 128, 8
        $region56: #{tpu_custom_call.1} parent=39 // pred_fallthru
          _
      $region40: #{tpu_custom_call.1} parent=5 // pred_fallthru
        _
      %p937 = scmp.le.s32.totalorder 2, %s25
      // Predicated region
      $region57: #{tpu_custom_call.1} parent=5 // pred_check
        %p938 = pneg %p937
      $region58: #{tpu_custom_call.1} parent=5 // pred_check_branch
        %940 = sbr.rel (%p938) target = $region60
      $region59: #{tpu_custom_call.1} parent=5 // pred_region
        %s941 = ssub.s32 %s25, 2
        // Predicated region
        $region61: #{tpu_custom_call.1} parent=59 // pred_check
          %p942 = pneg %p194
        $region62: #{tpu_custom_call.1} parent=59 // pred_check_branch
          %944 = sbr.rel (%p942) target = $region64
        $region63: #{tpu_custom_call.1} parent=59 // pred_region
          %s945 = sand.u32 %s179, 1
          %s946 = scalar_lea.sflag [#allocation4], %s945
          %s947 = sand.u32 %s179, 1
          %s948 = smul.addr %s947, 32
          %s949 = scalar_lea.vmem [#allocation7], %s948
          %950 = dma.done %s946, 512
        $region64: #{tpu_custom_call.1} parent=59 // pred_fallthru
          _
        // Predicated region
        $region65: #{tpu_custom_call.1} parent=59 // pred_check
          %p951 = pneg %p222
        $region66: #{tpu_custom_call.1} parent=59 // pred_check_branch
          %953 = sbr.rel (%p951) target = $region68
        $region67: #{tpu_custom_call.1} parent=59 // pred_region
          %s954 = sand.u32 %s207, 1
          %s955 = scalar_lea.sflag [#allocation9], %s954
          %s956 = sand.u32 %s207, 1
          %s957 = smul.addr %s956, 32
          %s958 = scalar_lea.vmem [#allocation8], %s957
          %959 = dma.done %s955, 512
        $region68: #{tpu_custom_call.1} parent=59 // pred_fallthru
          _
      $region60: #{tpu_custom_call.1} parent=5 // pred_fallthru
        _
    $region6: #{tpu_custom_call.1} parent=1 // loop_footer
      %s29 = sadd.s32 1, %s25
    $region7: #{tpu_custom_call.1} parent=1 // loop_footer_branch
      %24 = sbr.rel target = $region3
    $region8: #{tpu_custom_call.1} parent=1 // loop_exit
      _
    %960 = vsyncpa [#allocation3], 1
    %s961 = scalar_lea.sflag [#allocation3], 1
    %962 = vsyncpa %s961, 1
    %963 = vsyncpa [#allocation6], 1
    %s964 = scalar_lea.sflag [#allocation6], 1
    %965 = vsyncpa %s964, 1
    %966 = vsyncpa [#allocation4], 1
    %s967 = scalar_lea.sflag [#allocation4], 1
    %968 = vsyncpa %s967, 1
    %969 = vsyncpa [#allocation9], 1
    %s970 = scalar_lea.sflag [#allocation9], 1
    %971 = vsyncpa %s970, 1

</llo_original>
